<compile_context>
chip_gen: v7x
topology: tpu7x:2x2x1
jax: 0.10.0
libtpu: 0.0.40
codegen_flags: <defaults>
</compile_context>

<pallas_src>
import jax
import jax.numpy as jnp
from jax.experimental import pallas as pl
from jax.experimental.pallas import tpu as pltpu


def prenet_kernel(x_ref, w1_ref, b1_ref, w2_ref, b2_ref, o_ref):
    # x_ref:  (Bb, C_in, TT)  one (batch-chunk, time-tile) block of the input
    # w1_ref: (H, C_in)       fc1 weight (nn.Linear layout, used directly as W @ x)
    # b1_ref: (H, 1)
    # w2_ref: (C_out, H)      fc2 weight
    # b2_ref: (C_out, 1)
    # o_ref:  (Bb, C_out, TT)
    w1 = w1_ref[...]
    b1 = b1_ref[...]
    w2 = w2_ref[...]
    b2 = b2_ref[...]
    # Static unroll over the (small, <=8) batch chunk: plain 2-D MXU matmuls,
    # no cross-lane transposes; the lane (last) dim of every tile stays T.
    for bb in range(x_ref.shape[0]):
        x = x_ref[bb]                                                  # (C_in, TT)
        h = jnp.dot(w1, x, preferred_element_type=jnp.float32)
        h = jnp.maximum(h + b1, 0.0)                                   # relu1 (dropout1 = identity)
        y = jnp.dot(w2, h.astype(w2.dtype), preferred_element_type=jnp.float32)
        o_ref[bb] = jnp.maximum(y + b2, 0.0).astype(o_ref.dtype)       # relu2 (dropout2 = identity)


def _time_tile_cap():
    # Generation-tuned time-tile cap (128-aligned). v7x has ~2.3x the HBM BW of
    # v6e, so a larger tile is needed to stay DMA-bound rather than
    # per-grid-step-overhead-bound.
    try:
        kind = jax.devices()[0].device_kind.lower()
    except Exception:
        return 8192
    if "v7" in kind:
        return 16384
    return 8192


def prenet_forward(x, w1, b1, w2, b2, compute_dtype=None):
    """x: (B, C_in, T) -> (B, C_out, T), matching PyTorch Prenet.forward (eval mode)."""
    B, c_in, T = x.shape
    hidden = w1.shape[0]
    c_out = w2.shape[0]
    assert w1.shape == (hidden, c_in)
    assert w2.shape == (c_out, hidden)
    out_dtype = x.dtype

    if compute_dtype is not None:
        # Optional bf16 (etc.) activation/weight HBM traffic; accumulation and
        # bias/relu remain f32 inside the kernel.
        x = x.astype(compute_dtype)
        w1 = w1.astype(compute_dtype)
        w2 = w2.astype(compute_dtype)

    in_itemsize = jnp.dtype(x.dtype).itemsize
    out_itemsize = jnp.dtype(out_dtype).itemsize

    # --- Time tile: as large as useful for this memory-bound kernel.
    cap = _time_tile_cap()          # multiple of 128
    TT = T if T <= cap else cap
    n_t = pl.cdiv(T, TT)

    # --- Batch fold: when the whole time axis fits one tile, pack several batch
    # rows per grid step so each step moves O(MiB), not O(KiB). For tiny
    # problems (like the demo) this collapses to a single grid step.
    if n_t == 1:
        per_batch_bytes = T * (c_in * in_itemsize + c_out * out_itemsize)
        target_bytes = 2 << 20
        Bb = max(1, min(B, target_bytes // max(per_batch_bytes, 1)))
        Bb = int(min(Bb, 8))        # cap the static unroll depth inside the kernel
    else:
        Bb = 1
    n_b = pl.cdiv(B, Bb)

    # Biases as (C, 1) columns so they broadcast over the lane (time) dim.
    b1_2d = b1.reshape(hidden, 1)
    b2_2d = b2.reshape(c_out, 1)

    # --- Tight VMEM budget: double-buffered in/out tiles + f32 intermediate +
    # resident weights, with ~25% slack. Stays well under v7x's 64 MiB VMEM.
    in_tile = Bb * c_in * TT * in_itemsize
    out_tile = Bb * c_out * TT * out_itemsize
    h_tile = Bb * hidden * TT * 4
    weight_bytes = (hidden * c_in + c_out * hidden) * in_itemsize + (hidden + c_out) * 4
    need = 2 * (in_tile + out_tile) + h_tile + weight_bytes
    vmem_limit = int(min(max(int(need * 1.25) + (2 << 20), 4 << 20), 32 << 20))

    flops = 2 * B * T * (c_in * hidden + hidden * c_out)
    bytes_accessed = B * T * (c_in * in_itemsize + c_out * out_itemsize) + weight_bytes

    out = pl.pallas_call(
        prenet_kernel,
        out_shape=jax.ShapeDtypeStruct((B, c_out, T), out_dtype),
        grid=(n_b, n_t),
        in_specs=[
            # Activations: tiled over (batch-chunk, time); C is the sublane dim,
            # T the lane dim -> no wrapper-side transposes needed.
            pl.BlockSpec((Bb, c_in, TT), lambda b, t: (b, 0, t)),
            # Weights / biases: constant index_map -> DMA'd once, VMEM-resident.
            pl.BlockSpec((hidden, c_in), lambda b, t: (0, 0)),
            pl.BlockSpec((hidden, 1), lambda b, t: (0, 0)),
            pl.BlockSpec((c_out, hidden), lambda b, t: (0, 0)),
            pl.BlockSpec((c_out, 1), lambda b, t: (0, 0)),
        ],
        out_specs=pl.BlockSpec((Bb, c_out, TT), lambda b, t: (b, 0, t)),
        compiler_params=pltpu.CompilerParams(
            dimension_semantics=("parallel", "parallel"),
            vmem_limit_bytes=vmem_limit,
        ),
        cost_estimate=pl.CostEstimate(
            flops=flops, transcendentals=0, bytes_accessed=bytes_accessed),
    )(x, w1, b1_2d, w2, b2_2d)
    return out


def prenet_reference(x, w1, b1, w2, b2):
    """Pure-JAX reference mirroring the PyTorch forward (eval mode)."""
    B, c_in, T = x.shape
    xt = jnp.transpose(x, (0, 2, 1)).reshape(-1, c_in)
    h = jnp.maximum(xt @ w1.T + b1, 0.0)
    y = jnp.maximum(h @ w2.T + b2, 0.0)
    return jnp.transpose(y.reshape(B, T, -1), (0, 2, 1))


if __name__ == "__main__":
    # Small shapes: batch=2, input_size=16, hidden_size=32, output_size=24, seq len T=8.
    B, input_size, hidden_size, output_size, T = 2, 16, 32, 24, 8

    key = jax.random.PRNGKey(0)
    kx, kw1, kb1, kw2, kb2 = jax.random.split(key, 5)

    x = jax.random.normal(kx, (B, input_size, T), dtype=jnp.float32)
    # nn.Linear param shapes: weight (out, in), bias (out,)
    w1 = jax.random.normal(kw1, (hidden_size, input_size), dtype=jnp.float32) * 0.1
    b1 = jax.random.normal(kb1, (hidden_size,), dtype=jnp.float32) * 0.1
    w2 = jax.random.normal(kw2, (output_size, hidden_size), dtype=jnp.float32) * 0.1
    b2 = jax.random.normal(kb2, (output_size,), dtype=jnp.float32) * 0.1

    out = prenet_forward(x, w1, b1, w2, b2)
    jax.block_until_ready(out)

    ref = prenet_reference(x, w1, b1, w2, b2)
    assert out.shape == (B, output_size, T), out.shape
    assert jnp.allclose(out, ref, atol=1e-5, rtol=1e-5)

    print("KERNEL_OK")
</pallas_src>

<mosaic_0001>
module attributes {stable_mosaic.version = 11 : i64} {
  func.func @prenet_kernel(%arg0: i32, %arg1: i32, %arg2: memref<2x16x8xf32, #tpu.memory_space<vmem>>, %arg3: memref<32x16xf32, #tpu.memory_space<vmem>>, %arg4: memref<32x1xf32, #tpu.memory_space<vmem>>, %arg5: memref<24x32xf32, #tpu.memory_space<vmem>>, %arg6: memref<24x1xf32, #tpu.memory_space<vmem>>, %arg7: memref<2x24x8xf32, #tpu.memory_space<vmem>>) attributes {dimension_semantics = [#tpu.dimension_semantics<parallel>, #tpu.dimension_semantics<parallel>], iteration_bounds = array<i64: 1, 1>, scalar_prefetch = 0 : i64, scratch_operands = 0 : i64, tpu.core_type = #tpu.core_type<tc>, window_params = [{transform_indices = @transform_0, window_bounds = array<i64: 2, 16, 8>}, {pipeline_mode = #tpu.pipeline_mode<synchronous>, transform_indices = @transform_1, window_bounds = array<i64: 32, 16>}, {pipeline_mode = #tpu.pipeline_mode<synchronous>, transform_indices = @transform_2, window_bounds = array<i64: 32, 1>}, {pipeline_mode = #tpu.pipeline_mode<synchronous>, transform_indices = @transform_3, window_bounds = array<i64: 24, 32>}, {pipeline_mode = #tpu.pipeline_mode<synchronous>, transform_indices = @transform_4, window_bounds = array<i64: 24, 1>}, {transform_indices = @transform_5, window_bounds = array<i64: 2, 24, 8>}]} {
    %c0 = arith.constant 0 : index
    %c0_0 = arith.constant 0 : index
    %0 = vector.load %arg3[%c0, %c0_0] : memref<32x16xf32, #tpu.memory_space<vmem>>, vector<32x16xf32>
    %c0_1 = arith.constant 0 : index
    %c0_2 = arith.constant 0 : index
    %1 = vector.load %arg4[%c0_1, %c0_2] : memref<32x1xf32, #tpu.memory_space<vmem>>, vector<32x1xf32>
    %c0_3 = arith.constant 0 : index
    %c0_4 = arith.constant 0 : index
    %2 = vector.load %arg5[%c0_3, %c0_4] : memref<24x32xf32, #tpu.memory_space<vmem>>, vector<24x32xf32>
    %c0_5 = arith.constant 0 : index
    %c0_6 = arith.constant 0 : index
    %3 = vector.load %arg6[%c0_5, %c0_6] : memref<24x1xf32, #tpu.memory_space<vmem>>, vector<24x1xf32>
    %c0_7 = arith.constant 0 : index
    %c0_8 = arith.constant 0 : index
    %c0_9 = arith.constant 0 : index
    %4 = vector.load %arg2[%c0_7, %c0_8, %c0_9] : memref<2x16x8xf32, #tpu.memory_space<vmem>>, vector<1x16x8xf32>
    %5 = vector.shape_cast %4 : vector<1x16x8xf32> to vector<16x8xf32>
    %cst = arith.constant dense<0.000000e+00> : vector<32x8xf32>
    %6 = tpu.matmul %0, %5, %cst {dimension_numbers = #tpu.dot_dimension_numbers<[1], [0], [0], [1], [0, 0, 1, 1], [], []>} : vector<32x16xf32>, vector<16x8xf32>, vector<32x8xf32> -> vector<32x8xf32>
    %7 = vector.broadcast %1 : vector<32x1xf32> to vector<32x8xf32>
    %8 = arith.addf %6, %7 : vector<32x8xf32>
    %cst_10 = arith.constant 0.000000e+00 : f32
    %9 = vector.broadcast %cst_10 : f32 to vector<32x8xf32>
    %10 = arith.maximumf %8, %9 : vector<32x8xf32>
    %cst_11 = arith.constant dense<0.000000e+00> : vector<24x8xf32>
    %11 = tpu.matmul %2, %10, %cst_11 {dimension_numbers = #tpu.dot_dimension_numbers<[1], [0], [0], [1], [0, 0, 1, 1], [], []>} : vector<24x32xf32>, vector<32x8xf32>, vector<24x8xf32> -> vector<24x8xf32>
    %12 = vector.broadcast %3 : vector<24x1xf32> to vector<24x8xf32>
    %13 = arith.addf %11, %12 : vector<24x8xf32>
    %cst_12 = arith.constant 0.000000e+00 : f32
    %14 = vector.broadcast %cst_12 : f32 to vector<24x8xf32>
    %15 = arith.maximumf %13, %14 : vector<24x8xf32>
    %c0_13 = arith.constant 0 : index
    %c0_14 = arith.constant 0 : index
    %c0_15 = arith.constant 0 : index
    %16 = vector.load %arg7[%c0_13, %c0_14, %c0_15] : memref<2x24x8xf32, #tpu.memory_space<vmem>>, vector<1x24x8xf32>
    %17 = vector.shape_cast %16 : vector<1x24x8xf32> to vector<24x8xf32>
    %18 = vector.shape_cast %15 : vector<24x8xf32> to vector<1x24x8xf32>
    tpu.vector_store %arg7[%c0_13, %c0_14, %c0_15], %18 {strides = array<i32>} : memref<2x24x8xf32, #tpu.memory_space<vmem>>, vector<1x24x8xf32>,
    %c1 = arith.constant 1 : index
    %c0_16 = arith.constant 0 : index
    %c0_17 = arith.constant 0 : index
    %19 = vector.load %arg2[%c1, %c0_16, %c0_17] : memref<2x16x8xf32, #tpu.memory_space<vmem>>, vector<1x16x8xf32>
    %20 = vector.shape_cast %19 : vector<1x16x8xf32> to vector<16x8xf32>
    %cst_18 = arith.constant dense<0.000000e+00> : vector<32x8xf32>
    %21 = tpu.matmul %0, %20, %cst_18 {dimension_numbers = #tpu.dot_dimension_numbers<[1], [0], [0], [1], [0, 0, 1, 1], [], []>} : vector<32x16xf32>, vector<16x8xf32>, vector<32x8xf32> -> vector<32x8xf32>
    %22 = vector.broadcast %1 : vector<32x1xf32> to vector<32x8xf32>
    %23 = arith.addf %21, %22 : vector<32x8xf32>
    %cst_19 = arith.constant 0.000000e+00 : f32
    %24 = vector.broadcast %cst_19 : f32 to vector<32x8xf32>
    %25 = arith.maximumf %23, %24 : vector<32x8xf32>
    %cst_20 = arith.constant dense<0.000000e+00> : vector<24x8xf32>
    %26 = tpu.matmul %2, %25, %cst_20 {dimension_numbers = #tpu.dot_dimension_numbers<[1], [0], [0], [1], [0, 0, 1, 1], [], []>} : vector<24x32xf32>, vector<32x8xf32>, vector<24x8xf32> -> vector<24x8xf32>
    %27 = vector.broadcast %3 : vector<24x1xf32> to vector<24x8xf32>
    %28 = arith.addf %26, %27 : vector<24x8xf32>
    %cst_21 = arith.constant 0.000000e+00 : f32
    %29 = vector.broadcast %cst_21 : f32 to vector<24x8xf32>
    %30 = arith.maximumf %28, %29 : vector<24x8xf32>
    %c1_22 = arith.constant 1 : index
    %c0_23 = arith.constant 0 : index
    %c0_24 = arith.constant 0 : index
    %31 = vector.load %arg7[%c1_22, %c0_23, %c0_24] : memref<2x24x8xf32, #tpu.memory_space<vmem>>, vector<1x24x8xf32>
    %32 = vector.shape_cast %31 : vector<1x24x8xf32> to vector<24x8xf32>
    %33 = vector.shape_cast %30 : vector<24x8xf32> to vector<1x24x8xf32>
    tpu.vector_store %arg7[%c1_22, %c0_23, %c0_24], %33 {strides = array<i32>} : memref<2x24x8xf32, #tpu.memory_space<vmem>>, vector<1x24x8xf32>,
    return
  }
  func.func @transform_0(%arg0: i32, %arg1: i32) -> (i32, i32, i32) {
    %c0_i32 = arith.constant 0 : i32
    %c0_i32_0 = arith.constant 0 : i32
    return %arg0, %c0_i32, %arg1 : i32, i32, i32
  }
  func.func @transform_1(%arg0: i32, %arg1: i32) -> (i32, i32) {
    %c0_i32 = arith.constant 0 : i32
    %c0_i32_0 = arith.constant 0 : i32
    %c0_i32_1 = arith.constant 0 : i32
    return %c0_i32, %c0_i32_0 : i32, i32
  }
  func.func @transform_2(%arg0: i32, %arg1: i32) -> (i32, i32) {
    %c0_i32 = arith.constant 0 : i32
    %c0_i32_0 = arith.constant 0 : i32
    %c0_i32_1 = arith.constant 0 : i32
    return %c0_i32, %c0_i32_0 : i32, i32
  }
  func.func @transform_3(%arg0: i32, %arg1: i32) -> (i32, i32) {
    %c0_i32 = arith.constant 0 : i32
    %c0_i32_0 = arith.constant 0 : i32
    %c0_i32_1 = arith.constant 0 : i32
    return %c0_i32, %c0_i32_0 : i32, i32
  }
  func.func @transform_4(%arg0: i32, %arg1: i32) -> (i32, i32) {
    %c0_i32 = arith.constant 0 : i32
    %c0_i32_0 = arith.constant 0 : i32
    %c0_i32_1 = arith.constant 0 : i32
    return %c0_i32, %c0_i32_0 : i32, i32
  }
  func.func @transform_5(%arg0: i32, %arg1: i32) -> (i32, i32, i32) {
    %c0_i32 = arith.constant 0 : i32
    %c0_i32_0 = arith.constant 0 : i32
    return %arg0, %c0_i32, %arg1 : i32, i32, i32
  }
}

</mosaic_0001>

<llo_original>
// kernel: tpu_custom_call.1
$region0: #{tpu_custom_call.1}
  #allocation0 [shape = 'u32[]', space=smem, size = 0x4, offset = 0x4, fixed_abs, tag = 'smem constant byte address 0x4 - core index']
  #allocation1 [shape = 'u32[144,128]{1,0:T(1,128)}', space=vmem, size = 0x12000, scoped, tag = 'internal scratch']
  %s0 = inlined_call_operand.vmem [shape: f32[2,16,8], index: 0, kind: input, shape index: {}]
  %s1 = inlined_call_operand.vmem [shape: f32[32,16], index: 1, kind: input, shape index: {}]
  %s2 = inlined_call_operand.vmem [shape: f32[32,1], index: 2, kind: input, shape index: {}]
  %s3 = inlined_call_operand.vmem [shape: f32[24,32], index: 3, kind: input, shape index: {}]
  %s4 = inlined_call_operand.vmem [shape: f32[24,1], index: 4, kind: input, shape index: {}]
  %s5 = inlined_call_operand.vmem [shape: f32[2,24,8], index: 5, kind: output, shape index: {}]
  %s6 = sld [smem:[#allocation0]]
  $region30: #{tpu_custom_call.1} parent=0
    _
  %s8 = ssub.s32 1, %s6
  %s9 = scalar_select 0, %s8, %s6
  // Predicated region
  $region2: #{tpu_custom_call.1} parent=0 // pred_check
    _
  $region3: #{tpu_custom_call.1} parent=0 // pred_check_branch
    %11 = sbr.rel (0) target = $region5
  $region4: #{tpu_custom_call.1} parent=0 // pred_region
    _
  $region5: #{tpu_custom_call.1} parent=0 // pred_fallthru
    _
  // Predicated region
  $region6: #{tpu_custom_call.1} parent=0 // pred_check
    _
  $region7: #{tpu_custom_call.1} parent=0 // pred_check_branch
    %13 = sbr.rel (0) target = $region9
  $region8: #{tpu_custom_call.1} parent=0 // pred_region
    _
  $region9: #{tpu_custom_call.1} parent=0 // pred_fallthru
    _
  // Predicated region
  $region10: #{tpu_custom_call.1} parent=0 // pred_check
    _
  $region11: #{tpu_custom_call.1} parent=0 // pred_check_branch
    %15 = sbr.rel (0) target = $region13
  $region12: #{tpu_custom_call.1} parent=0 // pred_region
    _
  $region13: #{tpu_custom_call.1} parent=0 // pred_fallthru
    _
  // Predicated region
  $region14: #{tpu_custom_call.1} parent=0 // pred_check
    _
  $region15: #{tpu_custom_call.1} parent=0 // pred_check_branch
    %17 = sbr.rel (0) target = $region17
  $region16: #{tpu_custom_call.1} parent=0 // pred_region
    _
  $region17: #{tpu_custom_call.1} parent=0 // pred_fallthru
    _
  // Predicated region
  $region18: #{tpu_custom_call.1} parent=0 // pred_check
    _
  $region19: #{tpu_custom_call.1} parent=0 // pred_check_branch
    %19 = sbr.rel (0) target = $region21
  $region20: #{tpu_custom_call.1} parent=0 // pred_region
    _
  $region21: #{tpu_custom_call.1} parent=0 // pred_fallthru
    _
  %v20 = vld [vmem:[%s1] sm:$0xff]
  %v21 = vld [vmem:[%s1 + $0x8] sm:$0xff]
  %v22 = vld [vmem:[%s1 + $0x10] sm:$0xff]
  %v23 = vld [vmem:[%s1 + $0x18] sm:$0xff]
  %v24 = vld [vmem:[%s2] sm:$0xff]
  %v25 = vld [vmem:[%s2 + $0x8] sm:$0xff]
  %v26 = vld [vmem:[%s2 + $0x10] sm:$0xff]
  %v27 = vld [vmem:[%s2 + $0x18] sm:$0xff]
  %v28 = vld [vmem:[%s3] sm:$0xff]
  %v29 = vld [vmem:[%s3 + $0x8] sm:$0xff]
  %v30 = vld [vmem:[%s3 + $0x10] sm:$0xff]
  %v31 = vld [vmem:[%s4] sm:$0xff]
  %v32 = vld [vmem:[%s4 + $0x8] sm:$0xff]
  %v33 = vld [vmem:[%s4 + $0x10] sm:$0xff]
  %v34 = vld [vmem:[%s0] sm:$0xff]
  %v35 = vld [vmem:[%s0 + $0x8] sm:$0xff]
  %37 = vset.pattern.permute.xlu0 0
  %38 = vperm.xlu0 %37, %v24
  %v39 = vpop.permute.xlu0 %38
  %42 = vset.pattern.permute.xlu0 0
  %43 = vperm.xlu0 %42, %v25
  %v44 = vpop.permute.xlu0 %43
  %47 = vset.pattern.permute.xlu0 0
  %48 = vperm.xlu0 %47, %v26
  %v49 = vpop.permute.xlu0 %48
  %52 = vset.pattern.permute.xlu0 0
  %53 = vperm.xlu0 %52, %v27
  %v54 = vpop.permute.xlu0 %53
  %vm56 = vcmask 130048
  %v58 = vsel %vm56, %v20, 0
  %v61 = vsel %vm56, %v21, 0
  %v64 = vsel %vm56, %v22, 0
  %v67 = vsel %vm56, %v23, 0
  %69 = vmatprep.subr.mxu0 0.0
  %70 = vmatpush1.msra.mxu0 %v34
  %71 = vmatprep.subr.mxu0 0.0
  %72 = vmatpush1.msra.mxu0 %v35
  %73 = vmatprep.subr.mxu0 0.0
  %74 = vmatpush1.msra.mxu0 0.0
  %75 = vmatprep.subr.mxu0 0.0
  %76 = vmatpush1.msra.mxu0 0.0
  %77 = vmatprep.subr.mxu0 0.0
  %78 = vmatpush1.msra.mxu0 0.0
  %79 = vmatprep.subr.mxu0 0.0
  %80 = vmatpush1.msra.mxu0 0.0
  %81 = vmatprep.subr.mxu0 0.0
  %82 = vmatpush1.msra.mxu0 0.0
  %83 = vmatprep.subr.mxu0 0.0
  %84 = vmatpush1.msra.mxu0 0.0
  %85 = vmatprep.subr.mxu0 0.0
  %86 = vmatpush1.msra.mxu0 0.0
  %87 = vmatprep.subr.mxu0 0.0
  %88 = vmatpush1.msra.mxu0 0.0
  %89 = vmatprep.subr.mxu0 0.0
  %90 = vmatpush1.msra.mxu0 0.0
  %91 = vmatprep.subr.mxu0 0.0
  %92 = vmatpush1.msra.mxu0 0.0
  %93 = vmatprep.subr.mxu0 0.0
  %94 = vmatpush1.msra.mxu0 0.0
  %95 = vmatprep.subr.mxu0 0.0
  %96 = vmatpush1.msra.mxu0 0.0
  %97 = vmatprep.subr.mxu0 0.0
  %98 = vmatpush1.msra.mxu0 0.0
  %99 = vmatprep.subr.mxu0 0.0
  %100 = vmatpush1.msra.mxu0 0.0
  %101 = vmatprep.subr.mxu0 0.0
  %102 = vmatpush1.msra.mxu0 0.0
  %103 = vmatprep.subr.mxu0 0.0
  %104 = vmatpush1.msra.mxu0 0.0
  %105 = vmatprep.subr.mxu0 0.0
  %106 = vmatpush1.msra.mxu0 0.0
  %107 = vmatprep.subr.mxu0 0.0
  %108 = vmatpush1.msra.mxu0 0.0
  %109 = vmatprep.subr.mxu0 0.0
  %110 = vmatpush1.msra.mxu0 0.0
  %111 = vmatprep.subr.mxu0 0.0
  %112 = vmatpush1.msra.mxu0 0.0
  %113 = vmatprep.subr.mxu0 0.0
  %114 = vmatpush1.msra.mxu0 0.0
  %115 = vmatprep.subr.mxu0 0.0
  %116 = vmatpush1.msra.mxu0 0.0
  %117 = vmatprep.subr.mxu0 0.0
  %118 = vmatpush1.msra.mxu0 0.0
  %119 = vmatprep.subr.mxu0 0.0
  %120 = vmatpush1.msra.mxu0 0.0
  %121 = vmatprep.subr.mxu0 0.0
  %122 = vmatpush1.msra.mxu0 0.0
  %123 = vmatprep.subr.mxu0 0.0
  %124 = vmatpush1.msra.mxu0 0.0
  %125 = vmatprep.subr.mxu0 0.0
  %126 = vmatpush1.msra.mxu0 0.0
  %127 = vmatprep.subr.mxu0 0.0
  %128 = vmatpush1.msra.mxu0 0.0
  %129 = vmatprep.subr.mxu0 0.0
  %130 = vmatpush1.msra.mxu0 0.0
  %131 = vmatprep.subr.mxu0 0.0
  %132 = vmatpush1.msra.mxu0 0.0
  %133 = vmatprep.mubr.f32.mxu0 0.0
  %134 = vmatmul.mubr.f32.gmra.mrb[0].mxu0 %v58
  %v135 = vpop.f32.mrb[0].mxu0
  %v136 = vadd.f32 %v39, %v135
  %v137 = vpop.f32.mrb[0].mxu0
  %138 = vmatprep.mubr.f32.mxu0 0.0
  %139 = vmatmul.mubr.f32.gmra.mrb[0].mxu0 %v61
  %v140 = vpop.f32.mrb[0].mxu0
  %v141 = vadd.f32 %v44, %v140
  %v142 = vpop.f32.mrb[0].mxu0
  %143 = vmatprep.mubr.f32.mxu0 0.0
  %144 = vmatmul.mubr.f32.gmra.mrb[0].mxu0 %v64
  %v145 = vpop.f32.mrb[0].mxu0
  %v146 = vadd.f32 %v49, %v145
  %v147 = vpop.f32.mrb[0].mxu0
  %148 = vmatprep.mubr.f32.mxu0 0.0
  %149 = vmatmul.mubr.f32.gmra.mrb[0].mxu0 %v67
  %v150 = vpop.f32.mrb[0].mxu0
  %v151 = vadd.f32 %v54, %v150
  %v152 = vpop.f32.mrb[0].mxu0
  %153 = vdwg.mxu0
  %v154 = vmax.f32 %v136, 0.0
  %v155 = vmax.f32 %v141, 0.0
  %v156 = vmax.f32 %v146, 0.0
  %v157 = vmax.f32 %v151, 0.0
  %159 = vset.pattern.permute.xlu0 0
  %160 = vperm.xlu0 %159, %v31
  %v161 = vpop.permute.xlu0 %160
  %164 = vset.pattern.permute.xlu0 0
  %165 = vperm.xlu0 %164, %v32
  %v166 = vpop.permute.xlu0 %165
  %169 = vset.pattern.permute.xlu0 0
  %170 = vperm.xlu0 %169, %v33
  %v171 = vpop.permute.xlu0 %170
  %vm173 = vcmask 261120
  %v175 = vsel %vm173, %v28, 0
  %v178 = vsel %vm173, %v29, 0
  %v181 = vsel %vm173, %v30, 0
  %183 = vmatprep.subr.mxu0 0.0
  %184 = vmatpush1.msra.mxu0 %v154
  %185 = vmatprep.subr.mxu0 0.0
  %186 = vmatpush1.msra.mxu0 %v155
  %187 = vmatprep.subr.mxu0 0.0
  %188 = vmatpush1.msra.mxu0 %v156
  %189 = vmatprep.subr.mxu0 0.0
  %190 = vmatpush1.msra.mxu0 %v157
  %191 = vmatprep.subr.mxu0 0.0
  %192 = vmatpush1.msra.mxu0 0.0
  %193 = vmatprep.subr.mxu0 0.0
  %194 = vmatpush1.msra.mxu0 0.0
  %195 = vmatprep.subr.mxu0 0.0
  %196 = vmatpush1.msra.mxu0 0.0
  %197 = vmatprep.subr.mxu0 0.0
  %198 = vmatpush1.msra.mxu0 0.0
  %199 = vmatprep.subr.mxu0 0.0
  %200 = vmatpush1.msra.mxu0 0.0
  %201 = vmatprep.subr.mxu0 0.0
  %202 = vmatpush1.msra.mxu0 0.0
  %203 = vmatprep.subr.mxu0 0.0
  %204 = vmatpush1.msra.mxu0 0.0
  %205 = vmatprep.subr.mxu0 0.0
  %206 = vmatpush1.msra.mxu0 0.0
  %207 = vmatprep.subr.mxu0 0.0
  %208 = vmatpush1.msra.mxu0 0.0
  %209 = vmatprep.subr.mxu0 0.0
  %210 = vmatpush1.msra.mxu0 0.0
  %211 = vmatprep.subr.mxu0 0.0
  %212 = vmatpush1.msra.mxu0 0.0
  %213 = vmatprep.subr.mxu0 0.0
  %214 = vmatpush1.msra.mxu0 0.0
  %215 = vmatprep.subr.mxu0 0.0
  %216 = vmatpush1.msra.mxu0 0.0
  %217 = vmatprep.subr.mxu0 0.0
  %218 = vmatpush1.msra.mxu0 0.0
  %219 = vmatprep.subr.mxu0 0.0
  %220 = vmatpush1.msra.mxu0 0.0
  %221 = vmatprep.subr.mxu0 0.0
  %222 = vmatpush1.msra.mxu0 0.0
  %223 = vmatprep.subr.mxu0 0.0
  %224 = vmatpush1.msra.mxu0 0.0
  %225 = vmatprep.subr.mxu0 0.0
  %226 = vmatpush1.msra.mxu0 0.0
  %227 = vmatprep.subr.mxu0 0.0
  %228 = vmatpush1.msra.mxu0 0.0
  %229 = vmatprep.subr.mxu0 0.0
  %230 = vmatpush1.msra.mxu0 0.0
  %231 = vmatprep.subr.mxu0 0.0
  %232 = vmatpush1.msra.mxu0 0.0
  %233 = vmatprep.subr.mxu0 0.0
  %234 = vmatpush1.msra.mxu0 0.0
  %235 = vmatprep.subr.mxu0 0.0
  %236 = vmatpush1.msra.mxu0 0.0
  %237 = vmatprep.subr.mxu0 0.0
  %238 = vmatpush1.msra.mxu0 0.0
  %239 = vmatprep.subr.mxu0 0.0
  %240 = vmatpush1.msra.mxu0 0.0
  %241 = vmatprep.subr.mxu0 0.0
  %242 = vmatpush1.msra.mxu0 0.0
  %243 = vmatprep.subr.mxu0 0.0
  %244 = vmatpush1.msra.mxu0 0.0
  %245 = vmatprep.subr.mxu0 0.0
  %246 = vmatpush1.msra.mxu0 0.0
  %247 = vmatprep.mubr.f32.mxu0 0.0
  %248 = vmatmul.mubr.f32.gmra.mrb[0].mxu0 %v175
  %v249 = vpop.f32.mrb[0].mxu0
  %v250 = vadd.f32 %v161, %v249
  %v251 = vpop.f32.mrb[0].mxu0
  %252 = vmatprep.mubr.f32.mxu0 0.0
  %253 = vmatmul.mubr.f32.gmra.mrb[0].mxu0 %v178
  %v254 = vpop.f32.mrb[0].mxu0
  %v255 = vadd.f32 %v166, %v254
  %v256 = vpop.f32.mrb[0].mxu0
  %257 = vmatprep.mubr.f32.mxu0 0.0
  %258 = vmatmul.mubr.f32.gmra.mrb[0].mxu0 %v181
  %v259 = vpop.f32.mrb[0].mxu0
  %v260 = vadd.f32 %v171, %v259
  %v261 = vpop.f32.mrb[0].mxu0
  %262 = vdwg.mxu0
  %v263 = vmax.f32 %v250, 0.0
  %v264 = vmax.f32 %v255, 0.0
  %v265 = vmax.f32 %v260, 0.0
  %vm266 = vcmask 64512
  %267 = vst.msk [vmem:[%s5] sm:$0xff] %vm266, %v263
  %268 = vst.msk [vmem:[%s5 + $0x8] sm:$0xff] %vm266, %v264
  %269 = vst.msk [vmem:[%s5 + $0x10] sm:$0xff] %vm266, %v265
  %s270 = scalar_lea.vmem %s0, 16
  %v271 = vld [vmem:[%s270] sm:$0xff]
  %v272 = vld [vmem:[%s270 + $0x8] sm:$0xff]
  %273 = vmatprep.subr.mxu0 0.0
  %274 = vmatpush1.msra.mxu0 %v271
  %275 = vmatprep.subr.mxu0 0.0
  %276 = vmatpush1.msra.mxu0 %v272
  %277 = vmatprep.subr.mxu0 0.0
  %278 = vmatpush1.msra.mxu0 0.0
  %279 = vmatprep.subr.mxu0 0.0
  %280 = vmatpush1.msra.mxu0 0.0
  %281 = vmatprep.subr.mxu0 0.0
  %282 = vmatpush1.msra.mxu0 0.0
  %283 = vmatprep.subr.mxu0 0.0
  %284 = vmatpush1.msra.mxu0 0.0
  %285 = vmatprep.subr.mxu0 0.0
  %286 = vmatpush1.msra.mxu0 0.0
  %287 = vmatprep.subr.mxu0 0.0
  %288 = vmatpush1.msra.mxu0 0.0
  %289 = vmatprep.subr.mxu0 0.0
  %290 = vmatpush1.msra.mxu0 0.0
  %291 = vmatprep.subr.mxu0 0.0
  %292 = vmatpush1.msra.mxu0 0.0
  %293 = vmatprep.subr.mxu0 0.0
  %294 = vmatpush1.msra.mxu0 0.0
  %295 = vmatprep.subr.mxu0 0.0
  %296 = vmatpush1.msra.mxu0 0.0
  %297 = vmatprep.subr.mxu0 0.0
  %298 = vmatpush1.msra.mxu0 0.0
  %299 = vmatprep.subr.mxu0 0.0
  %300 = vmatpush1.msra.mxu0 0.0
  %301 = vmatprep.subr.mxu0 0.0
  %302 = vmatpush1.msra.mxu0 0.0
  %303 = vmatprep.subr.mxu0 0.0
  %304 = vmatpush1.msra.mxu0 0.0
  %305 = vmatprep.subr.mxu0 0.0
  %306 = vmatpush1.msra.mxu0 0.0
  %307 = vmatprep.subr.mxu0 0.0
  %308 = vmatpush1.msra.mxu0 0.0
  %309 = vmatprep.subr.mxu0 0.0
  %310 = vmatpush1.msra.mxu0 0.0
  %311 = vmatprep.subr.mxu0 0.0
  %312 = vmatpush1.msra.mxu0 0.0
  %313 = vmatprep.subr.mxu0 0.0
  %314 = vmatpush1.msra.mxu0 0.0
  %315 = vmatprep.subr.mxu0 0.0
  %316 = vmatpush1.msra.mxu0 0.0
  %317 = vmatprep.subr.mxu0 0.0
  %318 = vmatpush1.msra.mxu0 0.0
  %319 = vmatprep.subr.mxu0 0.0
  %320 = vmatpush1.msra.mxu0 0.0
  %321 = vmatprep.subr.mxu0 0.0
  %322 = vmatpush1.msra.mxu0 0.0
  %323 = vmatprep.subr.mxu0 0.0
  %324 = vmatpush1.msra.mxu0 0.0
  %325 = vmatprep.subr.mxu0 0.0
  %326 = vmatpush1.msra.mxu0 0.0
  %327 = vmatprep.subr.mxu0 0.0
  %328 = vmatpush1.msra.mxu0 0.0
  %329 = vmatprep.subr.mxu0 0.0
  %330 = vmatpush1.msra.mxu0 0.0
  %331 = vmatprep.subr.mxu0 0.0
  %332 = vmatpush1.msra.mxu0 0.0
  %333 = vmatprep.subr.mxu0 0.0
  %334 = vmatpush1.msra.mxu0 0.0
  %335 = vmatprep.subr.mxu0 0.0
  %336 = vmatpush1.msra.mxu0 0.0
  %337 = vmatprep.mubr.f32.mxu0 0.0
  %338 = vmatmul.mubr.f32.gmra.mrb[0].mxu0 %v58
  %v339 = vpop.f32.mrb[0].mxu0
  %v340 = vadd.f32 %v39, %v339
  %v341 = vpop.f32.mrb[0].mxu0
  %342 = vmatprep.mubr.f32.mxu0 0.0
  %343 = vmatmul.mubr.f32.gmra.mrb[0].mxu0 %v61
  %v344 = vpop.f32.mrb[0].mxu0
  %v345 = vadd.f32 %v44, %v344
  %v346 = vpop.f32.mrb[0].mxu0
  %347 = vmatprep.mubr.f32.mxu0 0.0
  %348 = vmatmul.mubr.f32.gmra.mrb[0].mxu0 %v64
  %v349 = vpop.f32.mrb[0].mxu0
  %v350 = vadd.f32 %v49, %v349
  %v351 = vpop.f32.mrb[0].mxu0
  %352 = vmatprep.mubr.f32.mxu0 0.0
  %353 = vmatmul.mubr.f32.gmra.mrb[0].mxu0 %v67
  %v354 = vpop.f32.mrb[0].mxu0
  %v355 = vadd.f32 %v54, %v354
  %v356 = vpop.f32.mrb[0].mxu0
  %357 = vdwg.mxu0
  %v358 = vmax.f32 %v340, 0.0
  %v359 = vmax.f32 %v345, 0.0
  %v360 = vmax.f32 %v350, 0.0
  %v361 = vmax.f32 %v355, 0.0
  %362 = vmatprep.subr.mxu0 0.0
  %363 = vmatpush1.msra.mxu0 %v358
  %364 = vmatprep.subr.mxu0 0.0
  %365 = vmatpush1.msra.mxu0 %v359
  %366 = vmatprep.subr.mxu0 0.0
  %367 = vmatpush1.msra.mxu0 %v360
  %368 = vmatprep.subr.mxu0 0.0
  %369 = vmatpush1.msra.mxu0 %v361
  %370 = vmatprep.subr.mxu0 0.0
  %371 = vmatpush1.msra.mxu0 0.0
  %372 = vmatprep.subr.mxu0 0.0
  %373 = vmatpush1.msra.mxu0 0.0
  %374 = vmatprep.subr.mxu0 0.0
  %375 = vmatpush1.msra.mxu0 0.0
  %376 = vmatprep.subr.mxu0 0.0
  %377 = vmatpush1.msra.mxu0 0.0
  %378 = vmatprep.subr.mxu0 0.0
  %379 = vmatpush1.msra.mxu0 0.0
  %380 = vmatprep.subr.mxu0 0.0
  %381 = vmatpush1.msra.mxu0 0.0
  %382 = vmatprep.subr.mxu0 0.0
  %383 = vmatpush1.msra.mxu0 0.0
  %384 = vmatprep.subr.mxu0 0.0
  %385 = vmatpush1.msra.mxu0 0.0
  %386 = vmatprep.subr.mxu0 0.0
  %387 = vmatpush1.msra.mxu0 0.0
  %388 = vmatprep.subr.mxu0 0.0
  %389 = vmatpush1.msra.mxu0 0.0
  %390 = vmatprep.subr.mxu0 0.0
  %391 = vmatpush1.msra.mxu0 0.0
  %392 = vmatprep.subr.mxu0 0.0
  %393 = vmatpush1.msra.mxu0 0.0
  %394 = vmatprep.subr.mxu0 0.0
  %395 = vmatpush1.msra.mxu0 0.0
  %396 = vmatprep.subr.mxu0 0.0
  %397 = vmatpush1.msra.mxu0 0.0
  %398 = vmatprep.subr.mxu0 0.0
  %399 = vmatpush1.msra.mxu0 0.0
  %400 = vmatprep.subr.mxu0 0.0
  %401 = vmatpush1.msra.mxu0 0.0
  %402 = vmatprep.subr.mxu0 0.0
  %403 = vmatpush1.msra.mxu0 0.0
  %404 = vmatprep.subr.mxu0 0.0
  %405 = vmatpush1.msra.mxu0 0.0
  %406 = vmatprep.subr.mxu0 0.0
  %407 = vmatpush1.msra.mxu0 0.0
  %408 = vmatprep.subr.mxu0 0.0
  %409 = vmatpush1.msra.mxu0 0.0
  %410 = vmatprep.subr.mxu0 0.0
  %411 = vmatpush1.msra.mxu0 0.0
  %412 = vmatprep.subr.mxu0 0.0
  %413 = vmatpush1.msra.mxu0 0.0
  %414 = vmatprep.subr.mxu0 0.0
  %415 = vmatpush1.msra.mxu0 0.0
  %416 = vmatprep.subr.mxu0 0.0
  %417 = vmatpush1.msra.mxu0 0.0
  %418 = vmatprep.subr.mxu0 0.0
  %419 = vmatpush1.msra.mxu0 0.0
  %420 = vmatprep.subr.mxu0 0.0
  %421 = vmatpush1.msra.mxu0 0.0
  %422 = vmatprep.subr.mxu0 0.0
  %423 = vmatpush1.msra.mxu0 0.0
  %424 = vmatprep.subr.mxu0 0.0
  %425 = vmatpush1.msra.mxu0 0.0
  %426 = vmatprep.mubr.f32.mxu0 0.0
  %427 = vmatmul.mubr.f32.gmra.mrb[0].mxu0 %v175
  %v428 = vpop.f32.mrb[0].mxu0
  %v429 = vadd.f32 %v161, %v428
  %v430 = vpop.f32.mrb[0].mxu0
  %431 = vmatprep.mubr.f32.mxu0 0.0
  %432 = vmatmul.mubr.f32.gmra.mrb[0].mxu0 %v178
  %v433 = vpop.f32.mrb[0].mxu0
  %v434 = vadd.f32 %v166, %v433
  %v435 = vpop.f32.mrb[0].mxu0
  %436 = vmatprep.mubr.f32.mxu0 0.0
  %437 = vmatmul.mubr.f32.gmra.mrb[0].mxu0 %v181
  %v438 = vpop.f32.mrb[0].mxu0
  %v439 = vadd.f32 %v171, %v438
  %v440 = vpop.f32.mrb[0].mxu0
  %441 = vdwg.mxu0
  %v442 = vmax.f32 %v429, 0.0
  %v443 = vmax.f32 %v434, 0.0
  %v444 = vmax.f32 %v439, 0.0
  %s445 = scalar_lea.vmem %s5, 24
  %446 = vst.msk [vmem:[%s445] sm:$0xff] %vm266, %v442
  %447 = vst.msk [vmem:[%s445 + $0x8] sm:$0xff] %vm266, %v443
  %448 = vst.msk [vmem:[%s445 + $0x10] sm:$0xff] %vm266, %v444
  // Predicated region
  $region22: #{tpu_custom_call.1} parent=0 // pred_check
    _
  $region23: #{tpu_custom_call.1} parent=0 // pred_check_branch
    %450 = sbr.rel (0) target = $region25
  $region24: #{tpu_custom_call.1} parent=0 // pred_region
    _
  $region25: #{tpu_custom_call.1} parent=0 // pred_fallthru
    _
  // Predicated region
  $region26: #{tpu_custom_call.1} parent=0 // pred_check
    _
  $region27: #{tpu_custom_call.1} parent=0 // pred_check_branch
    %452 = sbr.rel (0) target = $region29
  $region28: #{tpu_custom_call.1} parent=0 // pred_region
    _
  $region29: #{tpu_custom_call.1} parent=0 // pred_fallthru
    _

</llo_original>
